<compile_context>
chip_gen: v5e
topology: v5e:2x2
jax: 0.10.0
libtpu: 0.0.40
codegen_flags: <defaults>
</compile_context>

<pallas_src>
import functools

import jax
import jax.numpy as jnp
from jax import lax
from jax.experimental import pallas as pl
from jax.experimental.pallas import tpu as pltpu


def stacked_lstm_seq_kernel(x_ref, h0_ref, c0_ref, wih_ref, whh_ref, b_ref,
                            y_ref, h1_ref, c1_ref, *, num_layers, hidden):
    """One timestep per grid point; weights/state VMEM-resident across T."""
    H = hidden
    t = pl.program_id(0)

    # Seed the carried state at t == 0.  h1/c1 have a constant out index_map,
    # so they stay VMEM-resident across the whole T grid (written back to
    # HBM once at the end) and double as the recurrent state carry.
    @pl.when(t == 0)
    def _():
        h1_ref[...] = h0_ref[...]
        c1_ref[...] = c0_ref[...]

    inp = x_ref[0]                                       # (B, E) f32

    for layer in range(num_layers):                      # static unroll (small L)
        h = h1_ref[layer]                                # (B, H) f32
        c = c1_ref[layer]                                # (B, H) f32

        # Two direct MXU dots (bf16 multiplicands, f32 accumulate); the 4H
        # gate dimension (128) is lane-dense on the MXU output.
        gates = (jnp.dot(inp.astype(jnp.bfloat16), wih_ref[layer],
                         preferred_element_type=jnp.float32)
                 + jnp.dot(h.astype(jnp.bfloat16), whh_ref[layer],
                           preferred_element_type=jnp.float32)
                 + b_ref[layer])                         # (B, 4H) f32

        # Two full-tile transcendentals instead of four quarter-tile ones.
        sig = jax.nn.sigmoid(gates)
        tnh = jnp.tanh(gates)
        i = sig[:, 0 * H:1 * H]
        f = sig[:, 1 * H:2 * H]
        g = tnh[:, 2 * H:3 * H]
        o = sig[:, 3 * H:4 * H]

        c_new = f * c + i * g
        h_new = o * jnp.tanh(c_new)

        h1_ref[layer] = h_new
        c1_ref[layer] = c_new
        # Inter-layer nn.Dropout is identity at p = 0.0 / eval time.
        inp = h_new

    y_ref[0] = inp                                       # last layer's h at step t


def pack_params(params):
    """Pack LSTMCell weights ONCE (outside the per-step call path)."""
    wih_t = jnp.swapaxes(params["w_ih"], 1, 2).astype(jnp.bfloat16)   # (L, E, 4H)
    whh_t = jnp.swapaxes(params["w_hh"], 1, 2).astype(jnp.bfloat16)   # (L, H, 4H)
    b = (params["b_ih"] + params["b_hh"]).astype(jnp.float32)         # (L, 4H)
    num_layers, four_h = b.shape
    return {"w_ih_t": wih_t, "w_hh_t": whh_t,
            "b": b.reshape(num_layers, 1, four_h)}


@jax.jit
def stacked_lstm_run(xs, h0, c0, packed):
    """Run T LSTM-stack steps in a single pallas_call.

    xs: (T, B, E); h0, c0: (L, B, H). Returns (y:(T,B,H), h1, c1)."""
    T, B, E = xs.shape
    L, _, H = h0.shape

    kernel = functools.partial(stacked_lstm_seq_kernel,
                               num_layers=L, hidden=H)
    const3 = lambda t: (0, 0, 0)                         # resident across T

    y, h1, c1 = pl.pallas_call(
        kernel,
        grid=(T,),
        in_specs=[
            pl.BlockSpec((1, B, E), lambda t: (t, 0, 0)),      # x[t]
            pl.BlockSpec((L, B, H), const3),                   # h0 (loaded once)
            pl.BlockSpec((L, B, H), const3),                   # c0 (loaded once)
            pl.BlockSpec((L, E, 4 * H), const3),               # W_ih^T (bf16)
            pl.BlockSpec((L, H, 4 * H), const3),               # W_hh^T (bf16)
            pl.BlockSpec((L, 1, 4 * H), const3),               # folded bias
        ],
        out_specs=(
            pl.BlockSpec((1, B, H), lambda t: (t, 0, 0)),      # y[t]
            pl.BlockSpec((L, B, H), const3),                   # h1 (state carry)
            pl.BlockSpec((L, B, H), const3),                   # c1 (state carry)
        ),
        out_shape=(
            jax.ShapeDtypeStruct((T, B, H), jnp.float32),
            jax.ShapeDtypeStruct((L, B, H), jnp.float32),
            jax.ShapeDtypeStruct((L, B, H), jnp.float32),
        ),
        input_output_aliases={1: 1, 2: 2},                     # h0->h1, c0->c1
        compiler_params=pltpu.CompilerParams(
            dimension_semantics=("arbitrary",)),               # state carried
    )(xs, h0, c0, packed["w_ih_t"], packed["w_hh_t"], packed["b"])
    return y, h1, c1


def stacked_lstm_forward(x, hidden, packed):
    """Single-step forward matching StackedLSTM.forward. x: (B, E)."""
    h0, c0 = hidden
    y, h1, c1 = stacked_lstm_run(x[None], h0, c0, packed)
    return y[0], (h1, c1)


def stacked_lstm_decode(xs, hidden, packed):
    """T steps in one kernel launch (amortizes dispatch + weight DMA)."""
    h0, c0 = hidden
    y, h1, c1 = stacked_lstm_run(xs, h0, c0, packed)
    return y, (h1, c1)


def stacked_lstm_reference(x, hidden, params):
    """Pure-JAX reference of StackedLSTM.forward (eval-mode dropout)."""
    h0, c0 = hidden
    num_layers, _, H = h0.shape
    inp = x
    hs, cs = [], []
    for l in range(num_layers):
        gates = (jnp.dot(inp, params["w_ih"][l].T,
                         precision=lax.Precision.HIGHEST)
                 + jnp.dot(h0[l], params["w_hh"][l].T,
                           precision=lax.Precision.HIGHEST)
                 + params["b_ih"][l] + params["b_hh"][l])
        i = jax.nn.sigmoid(gates[:, :H])
        f = jax.nn.sigmoid(gates[:, H:2 * H])
        g = jnp.tanh(gates[:, 2 * H:3 * H])
        o = jax.nn.sigmoid(gates[:, 3 * H:])
        c_new = f * c0[l] + i * g
        h_new = o * jnp.tanh(c_new)
        hs.append(h_new)
        cs.append(c_new)
        inp = h_new
    return inp, (jnp.stack(hs), jnp.stack(cs))


def stacked_lstm_reference_seq(xs, hidden, params):
    h, c = hidden
    ys = []
    for t in range(xs.shape[0]):
        y, (h, c) = stacked_lstm_reference(xs[t], (h, c), params)
        ys.append(y)
    return jnp.stack(ys), (h, c)


def init_params(key, num_layers, input_size, hidden_size):
    """nn.LSTMCell-shaped parameters, stacked over layers."""
    assert input_size == hidden_size
    bound = 1.0 / jnp.sqrt(hidden_size)
    ks = jax.random.split(key, 4)

    def u(k, shape):
        return jax.random.uniform(k, shape, jnp.float32, -bound, bound)

    return {
        "w_ih": u(ks[0], (num_layers, 4 * hidden_size, input_size)),
        "w_hh": u(ks[1], (num_layers, 4 * hidden_size, hidden_size)),
        "b_ih": u(ks[2], (num_layers, 4 * hidden_size)),
        "b_hh": u(ks[3], (num_layers, 4 * hidden_size)),
    }


if __name__ == "__main__":
    NUM_LAYERS, B, HID, T = 2, 8, 32, 8

    key = jax.random.PRNGKey(0)
    k_par, k_x, k_h, k_c = jax.random.split(key, 4)
    params = init_params(k_par, NUM_LAYERS, HID, HID)
    packed = pack_params(params)      # built once, reused for every step/call

    xs = jax.random.normal(k_x, (T, B, HID), jnp.float32)
    h0 = 0.5 * jax.random.normal(k_h, (NUM_LAYERS, B, HID), jnp.float32)
    c0 = 0.5 * jax.random.normal(k_c, (NUM_LAYERS, B, HID), jnp.float32)

    # References (HIGHEST precision f32) computed up-front.
    out_ref1, (h1_ref1, c1_ref1) = stacked_lstm_reference(xs[0], (h0, c0), params)
    ys_ref, (hT_ref, cT_ref) = stacked_lstm_reference_seq(xs, (h0, c0), params)

    # Kernel uses bf16 MXU multiplicands vs the HIGHEST-precision f32
    # reference -> modest tolerance (error compounds mildly over T steps).
    TOL = dict(atol=2e-2, rtol=2e-2)

    # 1) Single timestep == exact semantics of StackedLSTM.forward.
    out1, (h1, c1) = jax.block_until_ready(
        stacked_lstm_forward(xs[0], (h0, c0), packed))
    assert out1.shape == (B, HID)
    assert h1.shape == (NUM_LAYERS, B, HID) and c1.shape == (NUM_LAYERS, B, HID)
    assert jnp.allclose(out1, out_ref1, **TOL)
    assert jnp.allclose(h1, h1_ref1, **TOL)
    assert jnp.allclose(c1, c1_ref1, **TOL)

    # 2) T timesteps in ONE pallas_call (weights DMA'd once, state carried
    #    in VMEM across the grid) == a Python loop of module forwards.
    ys, (hT, cT) = jax.block_until_ready(
        stacked_lstm_decode(xs, (h0, c0), packed))
    assert ys.shape == (T, B, HID)
    assert jnp.allclose(ys, ys_ref, **TOL)
    assert jnp.allclose(hT, hT_ref, **TOL)
    assert jnp.allclose(cT, cT_ref, **TOL)

    print("KERNEL_OK")
</pallas_src>

<mosaic_0001>
module attributes {stable_mosaic.version = 11 : i64} {
  func.func @stacked_lstm_seq_kernel(%arg0: i32, %arg1: memref<1x8x32xf32, #tpu.memory_space<vmem>>, %arg2: memref<2x8x32xf32, #tpu.memory_space<vmem>>, %arg3: memref<2x8x32xf32, #tpu.memory_space<vmem>>, %arg4: memref<2x32x128xbf16, #tpu.memory_space<vmem>>, %arg5: memref<2x32x128xbf16, #tpu.memory_space<vmem>>, %arg6: memref<2x1x128xf32, #tpu.memory_space<vmem>>, %arg7: memref<1x8x32xf32, #tpu.memory_space<vmem>>, %arg8: memref<2x8x32xf32, #tpu.memory_space<vmem>>, %arg9: memref<2x8x32xf32, #tpu.memory_space<vmem>>) attributes {dimension_semantics = [#tpu.dimension_semantics<arbitrary>], iteration_bounds = array<i64: 1>, scalar_prefetch = 0 : i64, scratch_operands = 0 : i64, tpu.core_type = #tpu.core_type<tc>, window_params = [{transform_indices = @transform_0, window_bounds = array<i64: 1, 8, 32>}, {pipeline_mode = #tpu.pipeline_mode<synchronous>, transform_indices = @transform_1, window_bounds = array<i64: 2, 8, 32>}, {pipeline_mode = #tpu.pipeline_mode<synchronous>, transform_indices = @transform_2, window_bounds = array<i64: 2, 8, 32>}, {pipeline_mode = #tpu.pipeline_mode<synchronous>, transform_indices = @transform_3, window_bounds = array<i64: 2, 32, 128>}, {pipeline_mode = #tpu.pipeline_mode<synchronous>, transform_indices = @transform_4, window_bounds = array<i64: 2, 32, 128>}, {pipeline_mode = #tpu.pipeline_mode<synchronous>, transform_indices = @transform_5, window_bounds = array<i64: 2, 1, 128>}, {transform_indices = @transform_6, window_bounds = array<i64: 1, 8, 32>}, {pipeline_mode = #tpu.pipeline_mode<synchronous>, transform_indices = @transform_7, window_bounds = array<i64: 2, 8, 32>}, {pipeline_mode = #tpu.pipeline_mode<synchronous>, transform_indices = @transform_8, window_bounds = array<i64: 2, 8, 32>}]} {
    %c0_i32 = arith.constant 0 : i32
    %0 = arith.cmpi eq, %arg0, %c0_i32 : i32
    %1 = arith.extui %0 : i1 to i32
    %c0_i32_0 = arith.constant 0 : i32
    %2 = arith.cmpi ne, %1, %c0_i32_0 : i32
    scf.if %2 {
      %c0_52 = arith.constant 0 : index
      %c0_53 = arith.constant 0 : index
      %c0_54 = arith.constant 0 : index
      %84 = vector.load %arg2[%c0_52, %c0_53, %c0_54] : memref<2x8x32xf32, #tpu.memory_space<vmem>>, vector<2x8x32xf32>
      %c0_55 = arith.constant 0 : index
      %c0_56 = arith.constant 0 : index
      %c0_57 = arith.constant 0 : index
      %85 = vector.load %arg8[%c0_55, %c0_56, %c0_57] : memref<2x8x32xf32, #tpu.memory_space<vmem>>, vector<2x8x32xf32>
      tpu.vector_store %arg8[%c0_55, %c0_56, %c0_57], %84 {strides = array<i32>} : memref<2x8x32xf32, #tpu.memory_space<vmem>>, vector<2x8x32xf32>,
      %c0_58 = arith.constant 0 : index
      %c0_59 = arith.constant 0 : index
      %c0_60 = arith.constant 0 : index
      %86 = vector.load %arg3[%c0_58, %c0_59, %c0_60] : memref<2x8x32xf32, #tpu.memory_space<vmem>>, vector<2x8x32xf32>
      %c0_61 = arith.constant 0 : index
      %c0_62 = arith.constant 0 : index
      %c0_63 = arith.constant 0 : index
      %87 = vector.load %arg9[%c0_61, %c0_62, %c0_63] : memref<2x8x32xf32, #tpu.memory_space<vmem>>, vector<2x8x32xf32>
      tpu.vector_store %arg9[%c0_61, %c0_62, %c0_63], %86 {strides = array<i32>} : memref<2x8x32xf32, #tpu.memory_space<vmem>>, vector<2x8x32xf32>,
    } else {
    }
    %c0 = arith.constant 0 : index
    %c0_1 = arith.constant 0 : index
    %c0_2 = arith.constant 0 : index
    %3 = vector.load %arg1[%c0, %c0_1, %c0_2] : memref<1x8x32xf32, #tpu.memory_space<vmem>>, vector<1x8x32xf32>
    %4 = vector.shape_cast %3 : vector<1x8x32xf32> to vector<8x32xf32>
    %c0_3 = arith.constant 0 : index
    %c0_4 = arith.constant 0 : index
    %c0_5 = arith.constant 0 : index
    %5 = vector.load %arg8[%c0_3, %c0_4, %c0_5] : memref<2x8x32xf32, #tpu.memory_space<vmem>>, vector<1x8x32xf32>
    %6 = vector.shape_cast %5 : vector<1x8x32xf32> to vector<8x32xf32>
    %c0_6 = arith.constant 0 : index
    %c0_7 = arith.constant 0 : index
    %c0_8 = arith.constant 0 : index
    %7 = vector.load %arg9[%c0_6, %c0_7, %c0_8] : memref<2x8x32xf32, #tpu.memory_space<vmem>>, vector<1x8x32xf32>
    %8 = vector.shape_cast %7 : vector<1x8x32xf32> to vector<8x32xf32>
    %9 = arith.truncf %4 : vector<8x32xf32> to vector<8x32xbf16>
    %c0_9 = arith.constant 0 : index
    %c0_10 = arith.constant 0 : index
    %c0_11 = arith.constant 0 : index
    %10 = vector.load %arg4[%c0_9, %c0_10, %c0_11] : memref<2x32x128xbf16, #tpu.memory_space<vmem>>, vector<1x32x128xbf16>
    %11 = vector.shape_cast %10 : vector<1x32x128xbf16> to vector<32x128xbf16>
    %cst = arith.constant dense<0.000000e+00> : vector<8x128xf32>
    %12 = tpu.matmul %9, %11, %cst {dimension_numbers = #tpu.dot_dimension_numbers<[1], [0], [0], [1], [0, 0, 1, 1], [], []>} : vector<8x32xbf16>, vector<32x128xbf16>, vector<8x128xf32> -> vector<8x128xf32>
    %13 = arith.truncf %6 : vector<8x32xf32> to vector<8x32xbf16>
    %c0_12 = arith.constant 0 : index
    %c0_13 = arith.constant 0 : index
    %c0_14 = arith.constant 0 : index
    %14 = vector.load %arg5[%c0_12, %c0_13, %c0_14] : memref<2x32x128xbf16, #tpu.memory_space<vmem>>, vector<1x32x128xbf16>
    %15 = vector.shape_cast %14 : vector<1x32x128xbf16> to vector<32x128xbf16>
    %cst_15 = arith.constant dense<0.000000e+00> : vector<8x128xf32>
    %16 = tpu.matmul %13, %15, %cst_15 {dimension_numbers = #tpu.dot_dimension_numbers<[1], [0], [0], [1], [0, 0, 1, 1], [], []>} : vector<8x32xbf16>, vector<32x128xbf16>, vector<8x128xf32> -> vector<8x128xf32>
    %17 = arith.addf %12, %16 : vector<8x128xf32>
    %c0_16 = arith.constant 0 : index
    %c0_17 = arith.constant 0 : index
    %c0_18 = arith.constant 0 : index
    %18 = vector.load %arg6[%c0_16, %c0_17, %c0_18] : memref<2x1x128xf32, #tpu.memory_space<vmem>>, vector<1x1x128xf32>
    %19 = vector.shape_cast %18 : vector<1x1x128xf32> to vector<1x128xf32>
    %20 = vector.broadcast %19 : vector<1x128xf32> to vector<8x128xf32>
    %21 = arith.addf %17, %20 : vector<8x128xf32>
    %22 = arith.negf %21 : vector<8x128xf32>
    %23 = math.exp %22 : vector<8x128xf32>
    %cst_19 = arith.constant 1.000000e+00 : f32
    %24 = vector.broadcast %cst_19 : f32 to vector<8x128xf32>
    %25 = arith.addf %24, %23 : vector<8x128xf32>
    %26 = arith.divf %24, %25 : vector<8x128xf32>
    %27 = math.tanh %21 : vector<8x128xf32>
    %28 = vector.extract_strided_slice %26 {offsets = [0, 0], sizes = [8, 32], strides = [1, 1]} : vector<8x128xf32> to vector<8x32xf32>
    %29 = vector.extract_strided_slice %26 {offsets = [0, 32], sizes = [8, 32], strides = [1, 1]} : vector<8x128xf32> to vector<8x32xf32>
    %30 = vector.extract_strided_slice %27 {offsets = [0, 64], sizes = [8, 32], strides = [1, 1]} : vector<8x128xf32> to vector<8x32xf32>
    %31 = vector.extract_strided_slice %26 {offsets = [0, 96], sizes = [8, 32], strides = [1, 1]} : vector<8x128xf32> to vector<8x32xf32>
    %32 = arith.mulf %29, %8 : vector<8x32xf32>
    %33 = arith.mulf %28, %30 : vector<8x32xf32>
    %34 = arith.addf %32, %33 : vector<8x32xf32>
    %35 = math.tanh %34 : vector<8x32xf32>
    %36 = arith.mulf %31, %35 : vector<8x32xf32>
    %c0_20 = arith.constant 0 : index
    %c0_21 = arith.constant 0 : index
    %c0_22 = arith.constant 0 : index
    %37 = vector.load %arg8[%c0_20, %c0_21, %c0_22] : memref<2x8x32xf32, #tpu.memory_space<vmem>>, vector<1x8x32xf32>
    %38 = vector.shape_cast %37 : vector<1x8x32xf32> to vector<8x32xf32>
    %39 = vector.shape_cast %36 : vector<8x32xf32> to vector<1x8x32xf32>
    tpu.vector_store %arg8[%c0_20, %c0_21, %c0_22], %39 {strides = array<i32>} : memref<2x8x32xf32, #tpu.memory_space<vmem>>, vector<1x8x32xf32>,
    %c0_23 = arith.constant 0 : index
    %c0_24 = arith.constant 0 : index
    %c0_25 = arith.constant 0 : index
    %40 = vector.load %arg9[%c0_23, %c0_24, %c0_25] : memref<2x8x32xf32, #tpu.memory_space<vmem>>, vector<1x8x32xf32>
    %41 = vector.shape_cast %40 : vector<1x8x32xf32> to vector<8x32xf32>
    %42 = vector.shape_cast %34 : vector<8x32xf32> to vector<1x8x32xf32>
    tpu.vector_store %arg9[%c0_23, %c0_24, %c0_25], %42 {strides = array<i32>} : memref<2x8x32xf32, #tpu.memory_space<vmem>>, vector<1x8x32xf32>,
    %c1 = arith.constant 1 : index
    %c0_26 = arith.constant 0 : index
    %c0_27 = arith.constant 0 : index
    %43 = vector.load %arg8[%c1, %c0_26, %c0_27] : memref<2x8x32xf32, #tpu.memory_space<vmem>>, vector<1x8x32xf32>
    %44 = vector.shape_cast %43 : vector<1x8x32xf32> to vector<8x32xf32>
    %c1_28 = arith.constant 1 : index
    %c0_29 = arith.constant 0 : index
    %c0_30 = arith.constant 0 : index
    %45 = vector.load %arg9[%c1_28, %c0_29, %c0_30] : memref<2x8x32xf32, #tpu.memory_space<vmem>>, vector<1x8x32xf32>
    %46 = vector.shape_cast %45 : vector<1x8x32xf32> to vector<8x32xf32>
    %47 = arith.truncf %36 : vector<8x32xf32> to vector<8x32xbf16>
    %c1_31 = arith.constant 1 : index
    %c0_32 = arith.constant 0 : index
    %c0_33 = arith.constant 0 : index
    %48 = vector.load %arg4[%c1_31, %c0_32, %c0_33] : memref<2x32x128xbf16, #tpu.memory_space<vmem>>, vector<1x32x128xbf16>
    %49 = vector.shape_cast %48 : vector<1x32x128xbf16> to vector<32x128xbf16>
    %cst_34 = arith.constant dense<0.000000e+00> : vector<8x128xf32>
    %50 = tpu.matmul %47, %49, %cst_34 {dimension_numbers = #tpu.dot_dimension_numbers<[1], [0], [0], [1], [0, 0, 1, 1], [], []>} : vector<8x32xbf16>, vector<32x128xbf16>, vector<8x128xf32> -> vector<8x128xf32>
    %51 = arith.truncf %44 : vector<8x32xf32> to vector<8x32xbf16>
    %c1_35 = arith.constant 1 : index
    %c0_36 = arith.constant 0 : index
    %c0_37 = arith.constant 0 : index
    %52 = vector.load %arg5[%c1_35, %c0_36, %c0_37] : memref<2x32x128xbf16, #tpu.memory_space<vmem>>, vector<1x32x128xbf16>
    %53 = vector.shape_cast %52 : vector<1x32x128xbf16> to vector<32x128xbf16>
    %cst_38 = arith.constant dense<0.000000e+00> : vector<8x128xf32>
    %54 = tpu.matmul %51, %53, %cst_38 {dimension_numbers = #tpu.dot_dimension_numbers<[1], [0], [0], [1], [0, 0, 1, 1], [], []>} : vector<8x32xbf16>, vector<32x128xbf16>, vector<8x128xf32> -> vector<8x128xf32>
    %55 = arith.addf %50, %54 : vector<8x128xf32>
    %c1_39 = arith.constant 1 : index
    %c0_40 = arith.constant 0 : index
    %c0_41 = arith.constant 0 : index
    %56 = vector.load %arg6[%c1_39, %c0_40, %c0_41] : memref<2x1x128xf32, #tpu.memory_space<vmem>>, vector<1x1x128xf32>
    %57 = vector.shape_cast %56 : vector<1x1x128xf32> to vector<1x128xf32>
    %58 = vector.broadcast %57 : vector<1x128xf32> to vector<8x128xf32>
    %59 = arith.addf %55, %58 : vector<8x128xf32>
    %60 = arith.negf %59 : vector<8x128xf32>
    %61 = math.exp %60 : vector<8x128xf32>
    %cst_42 = arith.constant 1.000000e+00 : f32
    %62 = vector.broadcast %cst_42 : f32 to vector<8x128xf32>
    %63 = arith.addf %62, %61 : vector<8x128xf32>
    %64 = arith.divf %62, %63 : vector<8x128xf32>
    %65 = math.tanh %59 : vector<8x128xf32>
    %66 = vector.extract_strided_slice %64 {offsets = [0, 0], sizes = [8, 32], strides = [1, 1]} : vector<8x128xf32> to vector<8x32xf32>
    %67 = vector.extract_strided_slice %64 {offsets = [0, 32], sizes = [8, 32], strides = [1, 1]} : vector<8x128xf32> to vector<8x32xf32>
    %68 = vector.extract_strided_slice %65 {offsets = [0, 64], sizes = [8, 32], strides = [1, 1]} : vector<8x128xf32> to vector<8x32xf32>
    %69 = vector.extract_strided_slice %64 {offsets = [0, 96], sizes = [8, 32], strides = [1, 1]} : vector<8x128xf32> to vector<8x32xf32>
    %70 = arith.mulf %67, %46 : vector<8x32xf32>
    %71 = arith.mulf %66, %68 : vector<8x32xf32>
    %72 = arith.addf %70, %71 : vector<8x32xf32>
    %73 = math.tanh %72 : vector<8x32xf32>
    %74 = arith.mulf %69, %73 : vector<8x32xf32>
    %c1_43 = arith.constant 1 : index
    %c0_44 = arith.constant 0 : index
    %c0_45 = arith.constant 0 : index
    %75 = vector.load %arg8[%c1_43, %c0_44, %c0_45] : memref<2x8x32xf32, #tpu.memory_space<vmem>>, vector<1x8x32xf32>
    %76 = vector.shape_cast %75 : vector<1x8x32xf32> to vector<8x32xf32>
    %77 = vector.shape_cast %74 : vector<8x32xf32> to vector<1x8x32xf32>
    tpu.vector_store %arg8[%c1_43, %c0_44, %c0_45], %77 {strides = array<i32>} : memref<2x8x32xf32, #tpu.memory_space<vmem>>, vector<1x8x32xf32>,
    %c1_46 = arith.constant 1 : index
    %c0_47 = arith.constant 0 : index
    %c0_48 = arith.constant 0 : index
    %78 = vector.load %arg9[%c1_46, %c0_47, %c0_48] : memref<2x8x32xf32, #tpu.memory_space<vmem>>, vector<1x8x32xf32>
    %79 = vector.shape_cast %78 : vector<1x8x32xf32> to vector<8x32xf32>
    %80 = vector.shape_cast %72 : vector<8x32xf32> to vector<1x8x32xf32>
    tpu.vector_store %arg9[%c1_46, %c0_47, %c0_48], %80 {strides = array<i32>} : memref<2x8x32xf32, #tpu.memory_space<vmem>>, vector<1x8x32xf32>,
    %c0_49 = arith.constant 0 : index
    %c0_50 = arith.constant 0 : index
    %c0_51 = arith.constant 0 : index
    %81 = vector.load %arg7[%c0_49, %c0_50, %c0_51] : memref<1x8x32xf32, #tpu.memory_space<vmem>>, vector<1x8x32xf32>
    %82 = vector.shape_cast %81 : vector<1x8x32xf32> to vector<8x32xf32>
    %83 = vector.shape_cast %74 : vector<8x32xf32> to vector<1x8x32xf32>
    tpu.vector_store %arg7[%c0_49, %c0_50, %c0_51], %83 {strides = array<i32>} : memref<1x8x32xf32, #tpu.memory_space<vmem>>, vector<1x8x32xf32>,
    return
  }
  func.func @transform_0(%arg0: i32) -> (i32, i32, i32) {
    %c0_i32 = arith.constant 0 : i32
    %c0_i32_0 = arith.constant 0 : i32
    %c0_i32_1 = arith.constant 0 : i32
    return %arg0, %c0_i32, %c0_i32_0 : i32, i32, i32
  }
  func.func @transform_1(%arg0: i32) -> (i32, i32, i32) {
    %c0_i32 = arith.constant 0 : i32
    %c0_i32_0 = arith.constant 0 : i32
    %c0_i32_1 = arith.constant 0 : i32
    %c0_i32_2 = arith.constant 0 : i32
    return %c0_i32, %c0_i32_0, %c0_i32_1 : i32, i32, i32
  }
  func.func @transform_2(%arg0: i32) -> (i32, i32, i32) {
    %c0_i32 = arith.constant 0 : i32
    %c0_i32_0 = arith.constant 0 : i32
    %c0_i32_1 = arith.constant 0 : i32
    %c0_i32_2 = arith.constant 0 : i32
    return %c0_i32, %c0_i32_0, %c0_i32_1 : i32, i32, i32
  }
  func.func @transform_3(%arg0: i32) -> (i32, i32, i32) {
    %c0_i32 = arith.constant 0 : i32
    %c0_i32_0 = arith.constant 0 : i32
    %c0_i32_1 = arith.constant 0 : i32
    %c0_i32_2 = arith.constant 0 : i32
    return %c0_i32, %c0_i32_0, %c0_i32_1 : i32, i32, i32
  }
  func.func @transform_4(%arg0: i32) -> (i32, i32, i32) {
    %c0_i32 = arith.constant 0 : i32
    %c0_i32_0 = arith.constant 0 : i32
    %c0_i32_1 = arith.constant 0 : i32
    %c0_i32_2 = arith.constant 0 : i32
    return %c0_i32, %c0_i32_0, %c0_i32_1 : i32, i32, i32
  }
  func.func @transform_5(%arg0: i32) -> (i32, i32, i32) {
    %c0_i32 = arith.constant 0 : i32
    %c0_i32_0 = arith.constant 0 : i32
    %c0_i32_1 = arith.constant 0 : i32
    %c0_i32_2 = arith.constant 0 : i32
    return %c0_i32, %c0_i32_0, %c0_i32_1 : i32, i32, i32
  }
  func.func @transform_6(%arg0: i32) -> (i32, i32, i32) {
    %c0_i32 = arith.constant 0 : i32
    %c0_i32_0 = arith.constant 0 : i32
    %c0_i32_1 = arith.constant 0 : i32
    return %arg0, %c0_i32, %c0_i32_0 : i32, i32, i32
  }
  func.func @transform_7(%arg0: i32) -> (i32, i32, i32) {
    %c0_i32 = arith.constant 0 : i32
    %c0_i32_0 = arith.constant 0 : i32
    %c0_i32_1 = arith.constant 0 : i32
    %c0_i32_2 = arith.constant 0 : i32
    return %c0_i32, %c0_i32_0, %c0_i32_1 : i32, i32, i32
  }
  func.func @transform_8(%arg0: i32) -> (i32, i32, i32) {
    %c0_i32 = arith.constant 0 : i32
    %c0_i32_0 = arith.constant 0 : i32
    %c0_i32_1 = arith.constant 0 : i32
    %c0_i32_2 = arith.constant 0 : i32
    return %c0_i32, %c0_i32_0, %c0_i32_1 : i32, i32, i32
  }
}

</mosaic_0001>

<llo_original>
// kernel: stacked_lstm_run.1
$region0: #{stacked_lstm_run.1}
  #allocation0 [shape = 'u32[]', space=smem, size = 0x4, offset = 0x4, fixed_abs, tag = 'smem constant byte address 0x4 - core index']
  #allocation1 [shape = 'u32[72,128]{1,0:T(1,128)}', space=vmem, size = 0x9000, scoped, tag = 'internal scratch']
  %s0 = inlined_call_operand.vmem [shape: f32[1,8,32], index: 0, kind: input, shape index: {}]
  %s1 = inlined_call_operand.hbm [shape: f32[2,8,32], index: 1, kind: input, shape index: {}, may-alias: {1,7}]
  %s2 = inlined_call_operand.hbm [shape: f32[2,8,32], index: 2, kind: input, shape index: {}, may-alias: {2,8}]
  %s3 = inlined_call_operand.vmem [shape: bf16[2,32,128], index: 3, kind: input, shape index: {}]
  %s4 = inlined_call_operand.hbm [shape: bf16[2,32,128], index: 4, kind: input, shape index: {}]
  %s5 = inlined_call_operand.vmem [shape: f32[2,1,128], index: 5, kind: input, shape index: {}]
  %s6 = inlined_call_operand.hbm [shape: f32[1,8,32], index: 6, kind: output, shape index: {0}]
  %s7 = inlined_call_operand.hbm [shape: f32[2,8,32], index: 7, kind: output, shape index: {1}, may-alias: {1,7}]
  %s8 = inlined_call_operand.hbm [shape: f32[2,8,32], index: 8, kind: output, shape index: {2}, may-alias: {2,8}]
  %9 = xla_tuple %s6, %s7, %s8
  %s10 = sld [smem:[#allocation0]]
  $region66: #{stacked_lstm_run.1} parent=0
    _
  %s12 = ssub.s32 1, %s10
  %s13 = scalar_select 0, %s12, %s10
  $region1: #{stacked_lstm_run.1} parent=0
    #allocation2 [shape = 'u8[8192]{0}', space=vmem, size = 0x2000, scoped, tag = 'input window, operand 1, single buffered']
    #allocation3 [shape = 's32[1]{0}', space=sflag, size = 0x4, scoped, tag = 'scoped memory for stacked_lstm_run.1']
    #allocation4 [shape = 's32[1]{0}', space=sflag, size = 0x4, scoped, tag = 'scoped memory for stacked_lstm_run.1']
    #allocation5 [shape = 'u8[8192]{0}', space=vmem, size = 0x2000, scoped, tag = 'input window, operand 2, single buffered']
    #allocation6 [shape = 's32[1]{0}', space=sflag, size = 0x4, scoped, tag = 'scoped memory for stacked_lstm_run.1']
    #allocation7 [shape = 'u8[16384]{0}', space=vmem, size = 0x4000, scoped, tag = 'input window, operand 4, single buffered']
    #allocation8 [shape = 'u8[4096]{0}', space=vmem, size = 0x1000, scoped, tag = 'output window, operand 0, single buffered']
    #allocation9 [shape = 'u8[8192]{0}', space=vmem, size = 0x2000, scoped, tag = 'output window, operand 1, single buffered']
    #allocation10 [shape = 's32[1]{0}', space=sflag, size = 0x4, scoped, tag = 'scoped memory for stacked_lstm_run.1']
    #allocation11 [shape = 'u8[8192]{0}', space=vmem, size = 0x2000, scoped, tag = 'output window, operand 2, single buffered']
    %14 = vsyncpa [#allocation3], 0
    %15 = vsyncpa [#allocation6], 0
    %16 = vsyncpa [#allocation4], 0
    %17 = vsyncpa [#allocation10], 0
    // Predicated region
    $region2: #{stacked_lstm_run.1} parent=1 // pred_check
      _
    $region3: #{stacked_lstm_run.1} parent=1 // pred_check_branch
      %19 = sbr.rel (0) target = $region5
    $region4: #{stacked_lstm_run.1} parent=1 // pred_region
      _
    $region5: #{stacked_lstm_run.1} parent=1 // pred_fallthru
      _
    // Predicated region
    $region6: #{stacked_lstm_run.1} parent=1 // pred_check
      _
    $region7: #{stacked_lstm_run.1} parent=1 // pred_check_branch
      %21 = sbr.rel (0) target = $region9
    $region8: #{stacked_lstm_run.1} parent=1 // pred_region
      %23 = vsyncadd [#allocation3], 0
      %s24 = sshll.u32 %s1, 4
      %s25 = int_to_ptr.hbm [resolvable:$true] %s24
      %s26 = sshll.u32 [#allocation2], 4
      %s27 = int_to_ptr.vmem [resolvable:$true] %s26
      %32 = dma.hbm_to_vmem [thread:$0]  %s25, 256, %s27, [#allocation3], 128, 128, 8
    $region9: #{stacked_lstm_run.1} parent=1 // pred_fallthru
      _
    // Predicated region
    $region10: #{stacked_lstm_run.1} parent=1 // pred_check
      _
    $region11: #{stacked_lstm_run.1} parent=1 // pred_check_branch
      %34 = sbr.rel (0) target = $region13
    $region12: #{stacked_lstm_run.1} parent=1 // pred_region
      %36 = vsyncadd [#allocation6], 0
      %s37 = sshll.u32 %s2, 4
      %s38 = int_to_ptr.hbm [resolvable:$true] %s37
      %s39 = sshll.u32 [#allocation5], 4
      %s40 = int_to_ptr.vmem [resolvable:$true] %s39
      %45 = dma.hbm_to_vmem [thread:$0]  %s38, 256, %s40, [#allocation6], 128, 128, 8
    $region13: #{stacked_lstm_run.1} parent=1 // pred_fallthru
      _
    // Predicated region
    $region14: #{stacked_lstm_run.1} parent=1 // pred_check
      _
    $region15: #{stacked_lstm_run.1} parent=1 // pred_check_branch
      %47 = sbr.rel (0) target = $region17
    $region16: #{stacked_lstm_run.1} parent=1 // pred_region
      _
    $region17: #{stacked_lstm_run.1} parent=1 // pred_fallthru
      _
    // Predicated region
    $region18: #{stacked_lstm_run.1} parent=1 // pred_check
      _
    $region19: #{stacked_lstm_run.1} parent=1 // pred_check_branch
      %49 = sbr.rel (0) target = $region21
    $region20: #{stacked_lstm_run.1} parent=1 // pred_region
      %51 = vsyncadd [#allocation6], 0
      %s52 = sshll.u32 %s4, 4
      %s53 = int_to_ptr.hbm [resolvable:$true] %s52
      %s54 = sshll.u32 [#allocation7], 4
      %s55 = int_to_ptr.vmem [resolvable:$true] %s54
      %60 = dma.hbm_to_vmem [thread:$0]  %s53, 512, %s55, [#allocation6], 64, 64, 4
    $region21: #{stacked_lstm_run.1} parent=1 // pred_fallthru
      _
    // Predicated region
    $region22: #{stacked_lstm_run.1} parent=1 // pred_check
      _
    $region23: #{stacked_lstm_run.1} parent=1 // pred_check_branch
      %62 = sbr.rel (0) target = $region25
    $region24: #{stacked_lstm_run.1} parent=1 // pred_region
      _
    $region25: #{stacked_lstm_run.1} parent=1 // pred_fallthru
      _
    // Predicated region
    $region26: #{stacked_lstm_run.1} parent=1 // pred_check
      _
    $region27: #{stacked_lstm_run.1} parent=1 // pred_check_branch
      %64 = sbr.rel (0) target = $region29
    $region28: #{stacked_lstm_run.1} parent=1 // pred_region
      %66 = dma.done [#allocation3], 256
    $region29: #{stacked_lstm_run.1} parent=1 // pred_fallthru
      _
    // Predicated region
    $region30: #{stacked_lstm_run.1} parent=1 // pred_check
      _
    $region31: #{stacked_lstm_run.1} parent=1 // pred_check_branch
      %68 = sbr.rel (0) target = $region33
    $region32: #{stacked_lstm_run.1} parent=1 // pred_region
      %70 = dma.done [#allocation6], 256
    $region33: #{stacked_lstm_run.1} parent=1 // pred_fallthru
      _
    // Predicated region
    $region34: #{stacked_lstm_run.1} parent=1 // pred_check
      _
    $region35: #{stacked_lstm_run.1} parent=1 // pred_check_branch
      %72 = sbr.rel (0) target = $region37
    $region36: #{stacked_lstm_run.1} parent=1 // pred_region
      %74 = dma.done [#allocation6], 512
    $region37: #{stacked_lstm_run.1} parent=1 // pred_fallthru
      _
    %p76 = scmp.eq.s32.totalorder 0, 0
    // Predicated region
    $region38: #{stacked_lstm_run.1} parent=1 // pred_check
      %p77 = pneg %p76
    $region39: #{stacked_lstm_run.1} parent=1 // pred_check_branch
      %79 = sbr.rel (%p77) target = $region41
    $region40: #{stacked_lstm_run.1} parent=1 // pred_region
      %v80 = vld [vmem:[#allocation2] sm:$0xff]
      %v81 = vld [vmem:[#allocation2 + $0x8] sm:$0xff]
      %vm82 = vcmask 261120
      %83 = vst.msk [vmem:[#allocation9] sm:$0xff] %vm82, %v80
      %84 = vst.msk [vmem:[#allocation9 + $0x8] sm:$0xff] %vm82, %v81
      %v85 = vld [vmem:[#allocation5] sm:$0xff]
      %v86 = vld [vmem:[#allocation5 + $0x8] sm:$0xff]
      %87 = vst.msk [vmem:[#allocation11] sm:$0xff] %vm82, %v85
      %88 = vst.msk [vmem:[#allocation11 + $0x8] sm:$0xff] %vm82, %v86
    $region41: #{stacked_lstm_run.1} parent=1 // pred_fallthru
      _
    %v89 = vld [vmem:[%s0] sm:$0xff]
    %v90 = vld [vmem:[#allocation9] sm:$0xff]
    %v91 = vld [vmem:[#allocation11] sm:$0xff]
    %v92 = vpack.c.bf16 %v89, %v89
    %v93 = vld [vmem:[%s3] sm:$0xf]
    %v94 = vld [vmem:[%s3 + $0x4] sm:$0xf]
    %v95 = vld [vmem:[%s3 + $0x8] sm:$0xf]
    %v96 = vld [vmem:[%s3 + $0xc] sm:$0xf]
    %v97 = vpack.c.bf16 %v90, %v90
    %v98 = vld [vmem:[#allocation7] sm:$0xf]
    %v99 = vld [vmem:[#allocation7 + $0x4] sm:$0xf]
    %v100 = vld [vmem:[#allocation7 + $0x8] sm:$0xf]
    %v101 = vld [vmem:[#allocation7 + $0xc] sm:$0xf]
    %v106 = vunpack.c.l.b16 %v98
    %v107 = vunpack.c.l.b16 %v99
    %v108 = vunpack.c.l.b16 %v100
    %v109 = vunpack.c.l.b16 %v101
    %v110 = vpack.c.b16 %v107, %v106
    %v111 = vpack.c.b16 %v109, %v108
    %vm114 = vcmask 261120
    %v116 = vsel %vm114, %v97, 0
    %118 = vmatpush.bf16.msra.mxu0 0
    %119 = vmatpush.bf16.msra.mxu0 0
    %120 = vmatpush.bf16.msra.mxu0 0
    %121 = vmatpush.bf16.msra.mxu0 0
    %122 = vmatpush.bf16.msra.mxu0 0
    %123 = vmatpush.bf16.msra.mxu0 0
    %124 = vmatpush.bf16.msra.mxu0 %v111
    %125 = vmatpush.bf16.msra.mxu0 %v110
    %126 = vmatmul.bf16.gmra.mxu0 %v116
    %v127 = vpop.f32.mrf.mxu0
    %v128 = vadd.f32 0.0, %v127
    %v129 = vpop.f32.mrf.mxu0
    %130 = vdwg.mxu0
    %v135 = vunpack.c.l.b16 %v93
    %v136 = vunpack.c.l.b16 %v94
    %v137 = vunpack.c.l.b16 %v95
    %v138 = vunpack.c.l.b16 %v96
    %v139 = vpack.c.b16 %v136, %v135
    %v140 = vpack.c.b16 %v138, %v137
    %v144 = vsel %vm114, %v92, 0
    %146 = vmatpush.bf16.msra.mxu0 0
    %147 = vmatpush.bf16.msra.mxu0 0
    %148 = vmatpush.bf16.msra.mxu0 0
    %149 = vmatpush.bf16.msra.mxu0 0
    %150 = vmatpush.bf16.msra.mxu0 0
    %151 = vmatpush.bf16.msra.mxu0 0
    %152 = vmatpush.bf16.msra.mxu0 %v140
    %153 = vmatpush.bf16.msra.mxu0 %v139
    %154 = vmatmul.bf16.gmra.mxu0 %v144
    %v155 = vpop.f32.mrf.mxu0
    %v156 = vadd.f32 %v128, %v155
    %v157 = vpop.f32.mrf.mxu0
    %158 = vdwg.mxu0
    %v159 = vld [vmem:[%s5] sm:$0x1]
    %v161 = vperm.slane %v159, 0
    %v163 = vadd.f32 %v156, %v161
    %v164 = vxor.u32 %v163, 2147483648
    %v165 = vmul.f32 %v164, 1.442695
    %v166 = vpow.pop %v165
    %v167 = vadd.f32 %v166, 1.0
    %v168 = vrcp.pop %v167
    %v169 = vmul.f32 %v167, %v168
    %v170 = vsub.f32 1.0, %v169
    %v171 = vmul.f32 %v168, %v170
    %v172 = vadd.f32 %v168, %v171
    %vm173 = vweird.f32 %v167
    %vm174 = vweird.f32 %v168
    %vm175 = vmor %vm173, %vm174
    %v176 = vsel %vm175, %v168, %v172
    %v177 = vand.u32 2147483647, %v167
    %vm178 = vcmp.eq.f32.partialorder %v177, 8.507059e+37
    %v179 = vand.u32 %v167, 2147483648
    %v180 = vor.u32 1.1754944e-38, %v179
    %v181 = vsel %vm178, %v180, %v176
    %v182 = vmul.f32 1.0, %v181
    %v183 = vtanh.pop %v163
    %185 = vrot.lane.b32.xlu0 %v91, 32
    %v186 = vpop.permute.xlu0 %185
    %v188 = vmul.f32 %v182, %v186
    %190 = vrot.lane.b32.xlu0 %v183, 64
    %v191 = vpop.permute.xlu0 %190
    %v193 = vmul.f32 %v182, %v191
    %195 = vrot.lane.b32.xlu0 %v193, 32
    %v196 = vpop.permute.xlu0 %195
    %v198 = vadd.f32 %v188, %v196
    %v199 = vtanh.pop %v198
    %201 = vrot.lane.b32.xlu0 %v199, 64
    %v202 = vpop.permute.xlu0 %201
    %v204 = vmul.f32 %v182, %v202
    %206 = vrot.lane.b32.xlu0 %v204, 32
    %v207 = vpop.permute.xlu0 %206
    %209 = vst.msk [vmem:[#allocation9] sm:$0xff] %vm114, %v207
    %211 = vrot.lane.b32.xlu0 %v198, 96
    %v212 = vpop.permute.xlu0 %211
    %214 = vst.msk [vmem:[#allocation11] sm:$0xff] %vm114, %v212
    %s215 = scalar_lea.vmem [#allocation9], 8
    %v216 = vld [vmem:[%s215] sm:$0xff]
    %s217 = scalar_lea.vmem [#allocation11], 8
    %v218 = vld [vmem:[%s217] sm:$0xff]
    %v219 = vpack.c.bf16 %v204, %v204
    %s220 = scalar_lea.vmem %s3, 16
    %v221 = vld [vmem:[%s220] sm:$0xf]
    %v222 = vld [vmem:[%s220 + $0x4] sm:$0xf]
    %v223 = vld [vmem:[%s220 + $0x8] sm:$0xf]
    %v224 = vld [vmem:[%s220 + $0xc] sm:$0xf]
    %v225 = vpack.c.bf16 %v216, %v216
    %s226 = scalar_lea.vmem [#allocation7], 16
    %v227 = vld [vmem:[%s226] sm:$0xf]
    %v228 = vld [vmem:[%s226 + $0x4] sm:$0xf]
    %v229 = vld [vmem:[%s226 + $0x8] sm:$0xf]
    %v230 = vld [vmem:[%s226 + $0xc] sm:$0xf]
    %v235 = vunpack.c.l.b16 %v227
    %v236 = vunpack.c.l.b16 %v228
    %v237 = vunpack.c.l.b16 %v229
    %v238 = vunpack.c.l.b16 %v230
    %v239 = vpack.c.b16 %v236, %v235
    %v240 = vpack.c.b16 %v238, %v237
    %v244 = vsel %vm114, %v225, 0
    %246 = vmatpush.bf16.msra.mxu0 0
    %247 = vmatpush.bf16.msra.mxu0 0
    %248 = vmatpush.bf16.msra.mxu0 0
    %249 = vmatpush.bf16.msra.mxu0 0
    %250 = vmatpush.bf16.msra.mxu0 0
    %251 = vmatpush.bf16.msra.mxu0 0
    %252 = vmatpush.bf16.msra.mxu0 %v240
    %253 = vmatpush.bf16.msra.mxu0 %v239
    %254 = vmatmul.bf16.gmra.mxu0 %v244
    %v255 = vpop.f32.mrf.mxu0
    %v256 = vadd.f32 0.0, %v255
    %v257 = vpop.f32.mrf.mxu0
    %258 = vdwg.mxu0
    %260 = vrot.lane.b32.xlu0 %v219, 32
    %v261 = vpop.permute.xlu0 %260
    %v266 = vunpack.c.l.b16 %v221
    %v267 = vunpack.c.l.b16 %v222
    %v268 = vunpack.c.l.b16 %v223
    %v269 = vunpack.c.l.b16 %v224
    %v270 = vpack.c.b16 %v267, %v266
    %v271 = vpack.c.b16 %v269, %v268
    %v275 = vsel %vm114, %v261, 0
    %277 = vmatpush.bf16.msra.mxu0 0
    %278 = vmatpush.bf16.msra.mxu0 0
    %279 = vmatpush.bf16.msra.mxu0 0
    %280 = vmatpush.bf16.msra.mxu0 0
    %281 = vmatpush.bf16.msra.mxu0 0
    %282 = vmatpush.bf16.msra.mxu0 0
    %283 = vmatpush.bf16.msra.mxu0 %v271
    %284 = vmatpush.bf16.msra.mxu0 %v270
    %285 = vmatmul.bf16.gmra.mxu0 %v275
    %v286 = vpop.f32.mrf.mxu0
    %v287 = vadd.f32 %v256, %v286
    %v288 = vpop.f32.mrf.mxu0
    %289 = vdwg.mxu0
    %s290 = scalar_lea.vmem %s5, 1
    %v291 = vld [vmem:[%s290] sm:$0x1]
    %v293 = vperm.slane %v291, 0
    %v295 = vadd.f32 %v287, %v293
    %v296 = vxor.u32 %v295, 2147483648
    %v297 = vmul.f32 %v296, 1.442695
    %v298 = vpow.pop %v297
    %v299 = vadd.f32 %v298, 1.0
    %v300 = vrcp.pop %v299
    %v301 = vmul.f32 %v299, %v300
    %v302 = vsub.f32 1.0, %v301
    %v303 = vmul.f32 %v300, %v302
    %v304 = vadd.f32 %v300, %v303
    %vm305 = vweird.f32 %v299
    %vm306 = vweird.f32 %v300
    %vm307 = vmor %vm305, %vm306
    %v308 = vsel %vm307, %v300, %v304
    %v309 = vand.u32 2147483647, %v299
    %vm310 = vcmp.eq.f32.partialorder %v309, 8.507059e+37
    %v311 = vand.u32 %v299, 2147483648
    %v312 = vor.u32 1.1754944e-38, %v311
    %v313 = vsel %vm310, %v312, %v308
    %v314 = vmul.f32 1.0, %v313
    %v315 = vtanh.pop %v295
    %317 = vrot.lane.b32.xlu0 %v218, 32
    %v318 = vpop.permute.xlu0 %317
    %v320 = vmul.f32 %v314, %v318
    %322 = vrot.lane.b32.xlu0 %v315, 64
    %v323 = vpop.permute.xlu0 %322
    %v325 = vmul.f32 %v314, %v323
    %327 = vrot.lane.b32.xlu0 %v325, 32
    %v328 = vpop.permute.xlu0 %327
    %v330 = vadd.f32 %v320, %v328
    %v331 = vtanh.pop %v330
    %333 = vrot.lane.b32.xlu0 %v331, 64
    %v334 = vpop.permute.xlu0 %333
    %v336 = vmul.f32 %v314, %v334
    %338 = vrot.lane.b32.xlu0 %v336, 32
    %v339 = vpop.permute.xlu0 %338
    %341 = vst.msk [vmem:[%s215] sm:$0xff] %vm114, %v339
    %343 = vrot.lane.b32.xlu0 %v330, 96
    %v344 = vpop.permute.xlu0 %343
    %346 = vst.msk [vmem:[%s217] sm:$0xff] %vm114, %v344
    %347 = vst.msk [vmem:[#allocation8] sm:$0xff] %vm114, %v339
    // Predicated region
    $region42: #{stacked_lstm_run.1} parent=1 // pred_check
      _
    $region43: #{stacked_lstm_run.1} parent=1 // pred_check_branch
      %349 = sbr.rel (0) target = $region45
    $region44: #{stacked_lstm_run.1} parent=1 // pred_region
      %351 = vsyncadd [#allocation4], 0
      %s353 = sshll.u32 [#allocation8], 4
      %s354 = int_to_ptr.vmem [resolvable:$true] %s353
      %s355 = sshll.u32 %s6, 4
      %s356 = int_to_ptr.hbm [resolvable:$true] %s355
      %358 = dma.vmem_to_hbm [thread:$0]  %s354, 128, %s356, [#allocation4]
    $region45: #{stacked_lstm_run.1} parent=1 // pred_fallthru
      _
    // Predicated region
    $region46: #{stacked_lstm_run.1} parent=1 // pred_check
      _
    $region47: #{stacked_lstm_run.1} parent=1 // pred_check_branch
      %360 = sbr.rel (0) target = $region49
    $region48: #{stacked_lstm_run.1} parent=1 // pred_region
      %362 = vsyncadd [#allocation10], 0
      %s363 = sshll.u32 [#allocation9], 4
      %s364 = int_to_ptr.vmem [resolvable:$true] %s363
      %s365 = sshll.u32 %s7, 4
      %s366 = int_to_ptr.hbm [resolvable:$true] %s365
      %371 = dma.vmem_to_hbm [thread:$0]  %s364, 256, %s366, [#allocation10], 128, 128, 8
    $region49: #{stacked_lstm_run.1} parent=1 // pred_fallthru
      _
    // Predicated region
    $region50: #{stacked_lstm_run.1} parent=1 // pred_check
      _
    $region51: #{stacked_lstm_run.1} parent=1 // pred_check_branch
      %373 = sbr.rel (0) target = $region53
    $region52: #{stacked_lstm_run.1} parent=1 // pred_region
      %375 = vsyncadd [#allocation10], 0
      %s376 = sshll.u32 [#allocation11], 4
      %s377 = int_to_ptr.vmem [resolvable:$true] %s376
      %s378 = sshll.u32 %s8, 4
      %s379 = int_to_ptr.hbm [resolvable:$true] %s378
      %384 = dma.vmem_to_hbm [thread:$0]  %s377, 256, %s379, [#allocation10], 128, 128, 8
    $region53: #{stacked_lstm_run.1} parent=1 // pred_fallthru
      _
    // Predicated region
    $region54: #{stacked_lstm_run.1} parent=1 // pred_check
      _
    $region55: #{stacked_lstm_run.1} parent=1 // pred_check_branch
      %386 = sbr.rel (0) target = $region57
    $region56: #{stacked_lstm_run.1} parent=1 // pred_region
      %388 = dma.done [#allocation4], 128
    $region57: #{stacked_lstm_run.1} parent=1 // pred_fallthru
      _
    // Predicated region
    $region58: #{stacked_lstm_run.1} parent=1 // pred_check
      _
    $region59: #{stacked_lstm_run.1} parent=1 // pred_check_branch
      %390 = sbr.rel (0) target = $region61
    $region60: #{stacked_lstm_run.1} parent=1 // pred_region
      %392 = dma.done [#allocation10], 256
    $region61: #{stacked_lstm_run.1} parent=1 // pred_fallthru
      _
    // Predicated region
    $region62: #{stacked_lstm_run.1} parent=1 // pred_check
      _
    $region63: #{stacked_lstm_run.1} parent=1 // pred_check_branch
      %394 = sbr.rel (0) target = $region65
    $region64: #{stacked_lstm_run.1} parent=1 // pred_region
      %396 = dma.done [#allocation10], 256
    $region65: #{stacked_lstm_run.1} parent=1 // pred_fallthru
      _
    %397 = vsyncpa [#allocation3], 1
    %398 = vsyncpa [#allocation6], 1
    %399 = vsyncpa [#allocation4], 1
    %400 = vsyncpa [#allocation10], 1

</llo_original>
